<compile_context>
chip_gen: v6e
topology: v6e:2x2x1
jax: 0.10.0
libtpu: 0.0.40
codegen_flags: <defaults>
</compile_context>

<pallas_src>
import jax
import jax.numpy as jnp
from jax.experimental import pallas as pl
from jax.experimental.pallas import tpu as pltpu


def _make_decoder_kernel(num_layers):
    """Kernel closure for a fixed number of Linear layers (last one -> tanh)."""

    def kernel(*refs):
        # refs = (z_ref, w0, b0, w1, b1, ..., wL, bL, out_ref)
        z_ref = refs[0]
        o_ref = refs[-1]
        p = refs[1:-1]

        h = z_ref[...]                      # (TILE_B, latent) f32
        for li in range(num_layers):
            w = p[2 * li][...]              # (in, out) bf16 -> MXU native
            b = p[2 * li + 1][...]          # (1, out)  f32
            acc = jnp.dot(h.astype(w.dtype), w,
                          preferred_element_type=jnp.float32)
            acc = acc + b                   # f32 bias-add
            if li < num_layers - 1:
                h = jnp.maximum(acc, 0.0)   # ReLU (f32, VPU)
            else:
                h = jnp.tanh(acc)           # final Tanh (f32, EUP)
        o_ref[...] = h.astype(o_ref.dtype)

    return kernel


def ae_decoder_forward(z, params, *, tile_b=128):
    """Fused AE_decoder forward in one pallas_call.

    Args:
      z: (B, latent_dim) float32.
      params: flat list [w0, b0, ..., wL, bL]; wi is (in_i, out_i) (already
              transposed vs. PyTorch), bi is (1, out_i). Any float dtype.
      tile_b: batch tile (rows per grid step); multiple of 8, default 128.
    Returns:
      (B, output_dim) float32.
    """
    num_layers = len(params) // 2
    B, latent_dim = z.shape
    out_dim = params[-2].shape[1]

    # Lane-dense output width (multiple of 128).
    out_pad = max(128, ((out_dim + 127) // 128) * 128)

    # Kernel-side params: bf16 weights, f32 biases; pad final layer to out_pad.
    kparams = []
    for li in range(num_layers):
        w = params[2 * li]
        b = params[2 * li + 1]
        if li == num_layers - 1 and out_pad != out_dim:
            w = jnp.pad(w, ((0, 0), (0, out_pad - out_dim)))
            b = jnp.pad(b, ((0, 0), (0, out_pad - out_dim)))
        kparams.append(w.astype(jnp.bfloat16))
        kparams.append(b.astype(jnp.float32))

    # Pad batch to a multiple of the batch tile.
    B_pad = ((B + tile_b - 1) // tile_b) * tile_b
    z_f32 = z.astype(jnp.float32)
    z_p = z_f32 if B_pad == B else jnp.pad(z_f32, ((0, B_pad - B), (0, 0)))
    grid = (B_pad // tile_b,)

    # BlockSpecs: activation tiles stream over the grid; params stay resident.
    in_specs = [pl.BlockSpec((tile_b, latent_dim), lambda i: (i, 0))]
    for li in range(num_layers):
        w = kparams[2 * li]
        b = kparams[2 * li + 1]
        in_specs.append(pl.BlockSpec(w.shape, lambda i: (0, 0)))
        in_specs.append(pl.BlockSpec(b.shape, lambda i: (0, 0)))
    out_spec = pl.BlockSpec((tile_b, out_pad), lambda i: (i, 0))

    # Advisory cost estimate for XLA's scheduler.
    flops = 0
    for li in range(num_layers):
        d_in, d_out = kparams[2 * li].shape
        flops += 2 * B_pad * d_in * d_out
    bytes_accessed = (
        z_p.size * 4
        + sum(p.size * p.dtype.itemsize for p in kparams)
        + B_pad * out_pad * 4
    )
    cost = pl.CostEstimate(
        flops=flops,
        transcendentals=B_pad * out_pad,      # tanh on the final layer
        bytes_accessed=bytes_accessed,
    )

    kernel = _make_decoder_kernel(num_layers)

    out = pl.pallas_call(
        kernel,
        out_shape=jax.ShapeDtypeStruct((B_pad, out_pad), jnp.float32),
        grid=grid,
        in_specs=in_specs,
        out_specs=out_spec,
        compiler_params=pltpu.CompilerParams(
            dimension_semantics=("parallel",),   # v7x: split batch tiles over 2 TCs
        ),
        cost_estimate=cost,
    )(z_p, *kparams)

    return out[:B, :out_dim]


def init_ae_decoder_params(key, latent_dim, hidden_dims, output_dim):
    """Deterministic init mirroring AE_decoder.__init__ layer shapes.

    Matches the PyTorch module: hidden_dims is reversed, then a chain of
    Linear(latent->h)+ReLU, ending with Linear(hidden_dims[-1]->output_dim)+Tanh.
    Weights are stored as (in, out) — transposed relative to torch's (out, in).
    """
    hdims = list(reversed(hidden_dims))
    dims = [latent_dim] + hdims + [output_dim]
    params = []
    for i in range(len(dims) - 1):
        d_in, d_out = dims[i], dims[i + 1]
        key, kw, kb = jax.random.split(key, 3)
        bound = 1.0 / jnp.sqrt(jnp.float32(d_in))
        w = jax.random.uniform(kw, (d_in, d_out), jnp.float32, -bound, bound)
        b = jax.random.uniform(kb, (1, d_out), jnp.float32, -bound, bound)
        params += [w, b]
    return params


def ae_decoder_reference(z, params):
    """Pure-JAX reference mirroring the kernel's numerics (bf16 matmul inputs,
    f32 accumulation / bias / activations)."""
    num_layers = len(params) // 2
    h = z.astype(jnp.float32)
    for li in range(num_layers):
        w = params[2 * li].astype(jnp.bfloat16)
        b = params[2 * li + 1].astype(jnp.float32)
        h = jnp.dot(h.astype(jnp.bfloat16), w,
                    preferred_element_type=jnp.float32) + b
        if li < num_layers - 1:
            h = jnp.maximum(h, 0.0)
        else:
            h = jnp.tanh(h)
    return h


def ae_decoder_reference_f32(z, params):
    """Full-precision reference (sanity check only)."""
    num_layers = len(params) // 2
    h = z
    for li in range(num_layers):
        h = h @ params[2 * li] + params[2 * li + 1]
        h = jnp.maximum(h, 0.0) if li < num_layers - 1 else jnp.tanh(h)
    return h


if __name__ == "__main__":
    # Small shapes consistent with the module's forward:
    # z: (batch, latent_dim); hidden_dims reversed inside init -> [32, 64].
    batch = 4
    latent_dim = 16
    hidden_dims = [64, 32]
    output_dim = 8

    key = jax.random.PRNGKey(0)
    key, zkey = jax.random.split(key)
    z = jax.random.normal(zkey, (batch, latent_dim), jnp.float32)

    params = init_ae_decoder_params(key, latent_dim, hidden_dims, output_dim)

    out = ae_decoder_forward(z, params)
    out = jax.block_until_ready(out)

    ref = ae_decoder_reference(z, params)          # kernel-matched numerics
    ref_f32 = ae_decoder_reference_f32(z, params)  # loose f32 sanity check

    assert out.shape == (batch, output_dim)
    assert jnp.allclose(out, ref, atol=2e-4, rtol=2e-4)
    assert jnp.allclose(out, ref_f32, atol=5e-2, rtol=5e-2)

    print("KERNEL_OK")
</pallas_src>

<mosaic_0001>
module attributes {stable_mosaic.version = 11 : i64} {
  func.func @kernel(%arg0: i32, %arg1: memref<128x16xf32, #tpu.memory_space<vmem>>, %arg2: memref<16x32xbf16, #tpu.memory_space<vmem>>, %arg3: memref<1x32xf32, #tpu.memory_space<vmem>>, %arg4: memref<32x64xbf16, #tpu.memory_space<vmem>>, %arg5: memref<1x64xf32, #tpu.memory_space<vmem>>, %arg6: memref<64x128xbf16, #tpu.memory_space<vmem>>, %arg7: memref<1x128xf32, #tpu.memory_space<vmem>>, %arg8: memref<128x128xf32, #tpu.memory_space<vmem>>) attributes {dimension_semantics = [#tpu.dimension_semantics<parallel>], iteration_bounds = array<i64: 1>, scalar_prefetch = 0 : i64, scratch_operands = 0 : i64, tpu.core_type = #tpu.core_type<tc>, window_params = [{transform_indices = @transform_0, window_bounds = array<i64: 128, 16>}, {pipeline_mode = #tpu.pipeline_mode<synchronous>, transform_indices = @transform_1, window_bounds = array<i64: 16, 32>}, {pipeline_mode = #tpu.pipeline_mode<synchronous>, transform_indices = @transform_2, window_bounds = array<i64: 1, 32>}, {pipeline_mode = #tpu.pipeline_mode<synchronous>, transform_indices = @transform_3, window_bounds = array<i64: 32, 64>}, {pipeline_mode = #tpu.pipeline_mode<synchronous>, transform_indices = @transform_4, window_bounds = array<i64: 1, 64>}, {pipeline_mode = #tpu.pipeline_mode<synchronous>, transform_indices = @transform_5, window_bounds = array<i64: 64, 128>}, {pipeline_mode = #tpu.pipeline_mode<synchronous>, transform_indices = @transform_6, window_bounds = array<i64: 1, 128>}, {transform_indices = @transform_7, window_bounds = array<i64: 128, 128>}]} {
    %c0 = arith.constant 0 : index
    %c0_0 = arith.constant 0 : index
    %0 = vector.load %arg1[%c0, %c0_0] : memref<128x16xf32, #tpu.memory_space<vmem>>, vector<128x16xf32>
    %c0_1 = arith.constant 0 : index
    %c0_2 = arith.constant 0 : index
    %1 = vector.load %arg2[%c0_1, %c0_2] : memref<16x32xbf16, #tpu.memory_space<vmem>>, vector<16x32xbf16>
    %c0_3 = arith.constant 0 : index
    %c0_4 = arith.constant 0 : index
    %2 = vector.load %arg3[%c0_3, %c0_4] : memref<1x32xf32, #tpu.memory_space<vmem>>, vector<1x32xf32>
    %3 = arith.truncf %0 : vector<128x16xf32> to vector<128x16xbf16>
    %cst = arith.constant dense<0.000000e+00> : vector<128x32xf32>
    %4 = tpu.matmul %3, %1, %cst {dimension_numbers = #tpu.dot_dimension_numbers<[1], [0], [0], [1], [0, 0, 1, 1], [], []>} : vector<128x16xbf16>, vector<16x32xbf16>, vector<128x32xf32> -> vector<128x32xf32>
    %5 = vector.broadcast %2 : vector<1x32xf32> to vector<128x32xf32>
    %6 = arith.addf %4, %5 : vector<128x32xf32>
    %cst_5 = arith.constant 0.000000e+00 : f32
    %7 = vector.broadcast %cst_5 : f32 to vector<128x32xf32>
    %8 = arith.maximumf %6, %7 : vector<128x32xf32>
    %c0_6 = arith.constant 0 : index
    %c0_7 = arith.constant 0 : index
    %9 = vector.load %arg4[%c0_6, %c0_7] : memref<32x64xbf16, #tpu.memory_space<vmem>>, vector<32x64xbf16>
    %c0_8 = arith.constant 0 : index
    %c0_9 = arith.constant 0 : index
    %10 = vector.load %arg5[%c0_8, %c0_9] : memref<1x64xf32, #tpu.memory_space<vmem>>, vector<1x64xf32>
    %11 = arith.truncf %8 : vector<128x32xf32> to vector<128x32xbf16>
    %cst_10 = arith.constant dense<0.000000e+00> : vector<128x64xf32>
    %12 = tpu.matmul %11, %9, %cst_10 {dimension_numbers = #tpu.dot_dimension_numbers<[1], [0], [0], [1], [0, 0, 1, 1], [], []>} : vector<128x32xbf16>, vector<32x64xbf16>, vector<128x64xf32> -> vector<128x64xf32>
    %13 = vector.broadcast %10 : vector<1x64xf32> to vector<128x64xf32>
    %14 = arith.addf %12, %13 : vector<128x64xf32>
    %cst_11 = arith.constant 0.000000e+00 : f32
    %15 = vector.broadcast %cst_11 : f32 to vector<128x64xf32>
    %16 = arith.maximumf %14, %15 : vector<128x64xf32>
    %c0_12 = arith.constant 0 : index
    %c0_13 = arith.constant 0 : index
    %17 = vector.load %arg6[%c0_12, %c0_13] : memref<64x128xbf16, #tpu.memory_space<vmem>>, vector<64x128xbf16>
    %c0_14 = arith.constant 0 : index
    %c0_15 = arith.constant 0 : index
    %18 = vector.load %arg7[%c0_14, %c0_15] : memref<1x128xf32, #tpu.memory_space<vmem>>, vector<1x128xf32>
    %19 = arith.truncf %16 : vector<128x64xf32> to vector<128x64xbf16>
    %cst_16 = arith.constant dense<0.000000e+00> : vector<128x128xf32>
    %20 = tpu.matmul %19, %17, %cst_16 {dimension_numbers = #tpu.dot_dimension_numbers<[1], [0], [0], [1], [0, 0, 1, 1], [], []>} : vector<128x64xbf16>, vector<64x128xbf16>, vector<128x128xf32> -> vector<128x128xf32>
    %21 = vector.broadcast %18 : vector<1x128xf32> to vector<128x128xf32>
    %22 = arith.addf %20, %21 : vector<128x128xf32>
    %23 = math.tanh %22 : vector<128x128xf32>
    %c0_17 = arith.constant 0 : index
    %c0_18 = arith.constant 0 : index
    %24 = vector.load %arg8[%c0_17, %c0_18] : memref<128x128xf32, #tpu.memory_space<vmem>>, vector<128x128xf32>
    tpu.vector_store %arg8[%c0_17, %c0_18], %23 {strides = array<i32>} : memref<128x128xf32, #tpu.memory_space<vmem>>, vector<128x128xf32>,
    return
  }
  func.func @transform_0(%arg0: i32) -> (i32, i32) {
    %c0_i32 = arith.constant 0 : i32
    %c0_i32_0 = arith.constant 0 : i32
    return %arg0, %c0_i32 : i32, i32
  }
  func.func @transform_1(%arg0: i32) -> (i32, i32) {
    %c0_i32 = arith.constant 0 : i32
    %c0_i32_0 = arith.constant 0 : i32
    %c0_i32_1 = arith.constant 0 : i32
    return %c0_i32, %c0_i32_0 : i32, i32
  }
  func.func @transform_2(%arg0: i32) -> (i32, i32) {
    %c0_i32 = arith.constant 0 : i32
    %c0_i32_0 = arith.constant 0 : i32
    %c0_i32_1 = arith.constant 0 : i32
    return %c0_i32, %c0_i32_0 : i32, i32
  }
  func.func @transform_3(%arg0: i32) -> (i32, i32) {
    %c0_i32 = arith.constant 0 : i32
    %c0_i32_0 = arith.constant 0 : i32
    %c0_i32_1 = arith.constant 0 : i32
    return %c0_i32, %c0_i32_0 : i32, i32
  }
  func.func @transform_4(%arg0: i32) -> (i32, i32) {
    %c0_i32 = arith.constant 0 : i32
    %c0_i32_0 = arith.constant 0 : i32
    %c0_i32_1 = arith.constant 0 : i32
    return %c0_i32, %c0_i32_0 : i32, i32
  }
  func.func @transform_5(%arg0: i32) -> (i32, i32) {
    %c0_i32 = arith.constant 0 : i32
    %c0_i32_0 = arith.constant 0 : i32
    %c0_i32_1 = arith.constant 0 : i32
    return %c0_i32, %c0_i32_0 : i32, i32
  }
  func.func @transform_6(%arg0: i32) -> (i32, i32) {
    %c0_i32 = arith.constant 0 : i32
    %c0_i32_0 = arith.constant 0 : i32
    %c0_i32_1 = arith.constant 0 : i32
    return %c0_i32, %c0_i32_0 : i32, i32
  }
  func.func @transform_7(%arg0: i32) -> (i32, i32) {
    %c0_i32 = arith.constant 0 : i32
    %c0_i32_0 = arith.constant 0 : i32
    return %arg0, %c0_i32 : i32, i32
  }
}

</mosaic_0001>

<llo_original>
// kernel: tpu_custom_call.1
$region0: #{tpu_custom_call.1}
  #allocation0 [shape = 'u32[]', space=smem, size = 0x4, offset = 0x4, fixed_abs, tag = 'smem constant byte address 0x4 - core index']
  #allocation1 [shape = 'u32[144,128]{1,0:T(1,128)}', space=vmem, size = 0x12000, scoped, tag = 'internal scratch']
  %s0 = inlined_call_operand.vmem [shape: f32[128,16], index: 0, kind: input, shape index: {}]
  %s1 = inlined_call_operand.vmem [shape: bf16[16,32], index: 1, kind: input, shape index: {}]
  %s2 = inlined_call_operand.vmem [shape: f32[1,32], index: 2, kind: input, shape index: {}]
  %s3 = inlined_call_operand.vmem [shape: bf16[32,64], index: 3, kind: input, shape index: {}]
  %s4 = inlined_call_operand.vmem [shape: f32[1,64], index: 4, kind: input, shape index: {}]
  %s5 = inlined_call_operand.vmem [shape: bf16[64,128], index: 5, kind: input, shape index: {}]
  %s6 = inlined_call_operand.vmem [shape: f32[1,128], index: 6, kind: input, shape index: {}]
  %s7 = inlined_call_operand.hbm [shape: f32[128,128], index: 7, kind: output, shape index: {}]
  %s8 = sld [smem:[#allocation0]]
  $region38: #{tpu_custom_call.1} parent=0
    _
  %s10 = ssub.s32 1, %s8
  %s11 = scalar_select 0, %s10, %s8
  $region1: #{tpu_custom_call.1} parent=0
    #allocation2 [shape = 'u8[65536]{0}', space=vmem, size = 0x10000, scoped, tag = 'output window, operand 0, single buffered']
    #allocation3 [shape = 's32[1]{0}', space=sflag, size = 0x4, scoped, tag = 'scoped memory for tpu_custom_call.1']
    %12 = vsyncpa [#allocation3], 0
    // Predicated region
    $region2: #{tpu_custom_call.1} parent=1 // pred_check
      _
    $region3: #{tpu_custom_call.1} parent=1 // pred_check_branch
      %14 = sbr.rel (0) target = $region5
    $region4: #{tpu_custom_call.1} parent=1 // pred_region
      _
    $region5: #{tpu_custom_call.1} parent=1 // pred_fallthru
      _
    // Predicated region
    $region6: #{tpu_custom_call.1} parent=1 // pred_check
      _
    $region7: #{tpu_custom_call.1} parent=1 // pred_check_branch
      %16 = sbr.rel (0) target = $region9
    $region8: #{tpu_custom_call.1} parent=1 // pred_region
      _
    $region9: #{tpu_custom_call.1} parent=1 // pred_fallthru
      _
    // Predicated region
    $region10: #{tpu_custom_call.1} parent=1 // pred_check
      _
    $region11: #{tpu_custom_call.1} parent=1 // pred_check_branch
      %18 = sbr.rel (0) target = $region13
    $region12: #{tpu_custom_call.1} parent=1 // pred_region
      _
    $region13: #{tpu_custom_call.1} parent=1 // pred_fallthru
      _
    // Predicated region
    $region14: #{tpu_custom_call.1} parent=1 // pred_check
      _
    $region15: #{tpu_custom_call.1} parent=1 // pred_check_branch
      %20 = sbr.rel (0) target = $region17
    $region16: #{tpu_custom_call.1} parent=1 // pred_region
      _
    $region17: #{tpu_custom_call.1} parent=1 // pred_fallthru
      _
    // Predicated region
    $region18: #{tpu_custom_call.1} parent=1 // pred_check
      _
    $region19: #{tpu_custom_call.1} parent=1 // pred_check_branch
      %22 = sbr.rel (0) target = $region21
    $region20: #{tpu_custom_call.1} parent=1 // pred_region
      _
    $region21: #{tpu_custom_call.1} parent=1 // pred_fallthru
      _
    // Predicated region
    $region22: #{tpu_custom_call.1} parent=1 // pred_check
      _
    $region23: #{tpu_custom_call.1} parent=1 // pred_check_branch
      %24 = sbr.rel (0) target = $region25
    $region24: #{tpu_custom_call.1} parent=1 // pred_region
      _
    $region25: #{tpu_custom_call.1} parent=1 // pred_fallthru
      _
    // Predicated region
    $region26: #{tpu_custom_call.1} parent=1 // pred_check
      _
    $region27: #{tpu_custom_call.1} parent=1 // pred_check_branch
      %26 = sbr.rel (0) target = $region29
    $region28: #{tpu_custom_call.1} parent=1 // pred_region
      _
    $region29: #{tpu_custom_call.1} parent=1 // pred_fallthru
      _
    %v28 = vld [vmem:[%s0] sm:$0xff]
    %v29 = vld [vmem:[%s0 + $0x8] sm:$0xff]
    %v30 = vld [vmem:[%s0 + $0x10] sm:$0xff]
    %v31 = vld [vmem:[%s0 + $0x18] sm:$0xff]
    %v32 = vld [vmem:[%s0 + $0x20] sm:$0xff]
    %v33 = vld [vmem:[%s0 + $0x28] sm:$0xff]
    %v34 = vld [vmem:[%s0 + $0x30] sm:$0xff]
    %v35 = vld [vmem:[%s0 + $0x38] sm:$0xff]
    %v36 = vld [vmem:[%s0 + $0x40] sm:$0xff]
    %v37 = vld [vmem:[%s0 + $0x48] sm:$0xff]
    %v38 = vld [vmem:[%s0 + $0x50] sm:$0xff]
    %v39 = vld [vmem:[%s0 + $0x58] sm:$0xff]
    %v40 = vld [vmem:[%s0 + $0x60] sm:$0xff]
    %v41 = vld [vmem:[%s0 + $0x68] sm:$0xff]
    %v42 = vld [vmem:[%s0 + $0x70] sm:$0xff]
    %v43 = vld [vmem:[%s0 + $0x78] sm:$0xff]
    %v44 = vld [vmem:[%s1] sm:$0xf]
    %v45 = vld [vmem:[%s1 + $0x4] sm:$0xf]
    %v46 = vld [vmem:[%s2] sm:$0x1]
    %v47 = vpack.c.bf16 %v29, %v28
    %v48 = vpack.c.bf16 %v31, %v30
    %v49 = vpack.c.bf16 %v33, %v32
    %v50 = vpack.c.bf16 %v35, %v34
    %v51 = vpack.c.bf16 %v37, %v36
    %v52 = vpack.c.bf16 %v39, %v38
    %v53 = vpack.c.bf16 %v41, %v40
    %v54 = vpack.c.bf16 %v43, %v42
    %v56 = vlaneseq
    %v57 = vshrl.u32 %v56, 7
    %v58 = vsub.s32 0, %v57
    %v59 = vrot.slane %v46, %v58
    %v63 = vunpack.c.l.b16 %v44
    %v64 = vunpack.c.l.b16 %v45
    %v65 = vpack.c.b16 %v64, %v63
    %vm67 = vcmask 130048
    %v69 = vsel %vm67, %v47, 0
    %v72 = vsel %vm67, %v48, 0
    %v75 = vsel %vm67, %v49, 0
    %v78 = vsel %vm67, %v50, 0
    %v81 = vsel %vm67, %v51, 0
    %v84 = vsel %vm67, %v52, 0
    %v87 = vsel %vm67, %v53, 0
    %v90 = vsel %vm67, %v54, 0
    %92 = vmatprep.subr.bf16.mxu0 0
    %93 = vmatpush1.bf16.msra.mxu0 0
    %94 = vmatprep.subr.bf16.mxu0 0
    %95 = vmatpush1.bf16.msra.mxu0 0
    %96 = vmatprep.subr.bf16.mxu0 0
    %97 = vmatpush1.bf16.msra.mxu0 0
    %98 = vmatprep.subr.bf16.mxu0 0
    %99 = vmatpush1.bf16.msra.mxu0 0
    %100 = vmatprep.subr.bf16.mxu0 0
    %101 = vmatpush1.bf16.msra.mxu0 0
    %102 = vmatprep.subr.bf16.mxu0 0
    %103 = vmatpush1.bf16.msra.mxu0 0
    %104 = vmatprep.subr.bf16.mxu0 0
    %105 = vmatpush1.bf16.msra.mxu0 0
    %106 = vmatprep.subr.bf16.mxu0 0
    %107 = vmatpush1.bf16.msra.mxu0 %v65
    %108 = vmatprep.subr.bf16.mxu0 0
    %109 = vmatpush2.bf16.msra.mxu0 0
    %110 = vmatprep.subr.bf16.mxu0 0
    %111 = vmatpush2.bf16.msra.mxu0 0
    %112 = vmatprep.subr.bf16.mxu0 0
    %113 = vmatpush2.bf16.msra.mxu0 0
    %114 = vmatprep.subr.bf16.mxu0 0
    %115 = vmatpush2.bf16.msra.mxu0 0
    %116 = vmatprep.subr.bf16.mxu0 0
    %117 = vmatpush2.bf16.msra.mxu0 0
    %118 = vmatprep.subr.bf16.mxu0 0
    %119 = vmatpush2.bf16.msra.mxu0 0
    %120 = vmatprep.subr.bf16.mxu0 0
    %121 = vmatpush2.bf16.msra.mxu0 0
    %122 = vmatprep.subr.bf16.mxu0 0
    %123 = vmatpush2.bf16.msra.mxu0 0
    %124 = vmatprep.mubr.bf16.mxu0 0
    %125 = vmatmul.mubr.bf16.gmra.mxu0 %v69
    %v126 = vpop.f32.mrf.mxu0
    %v127 = vadd.f32 %v59, %v126
    %v128 = vpop.f32.mrf.mxu0
    %v129 = vpop.f32.mrf.mxu0
    %v130 = vadd.f32 %v59, %v129
    %v131 = vpop.f32.mrf.mxu0
    %132 = vmatprep.mubr.bf16.mxu0 0
    %133 = vmatmul.mubr.bf16.gmra.mxu0 %v72
    %v134 = vpop.f32.mrf.mxu0
    %v135 = vadd.f32 %v59, %v134
    %v136 = vpop.f32.mrf.mxu0
    %v137 = vpop.f32.mrf.mxu0
    %v138 = vadd.f32 %v59, %v137
    %v139 = vpop.f32.mrf.mxu0
    %140 = vmatprep.mubr.bf16.mxu0 0
    %141 = vmatmul.mubr.bf16.gmra.mxu0 %v75
    %v142 = vpop.f32.mrf.mxu0
    %v143 = vadd.f32 %v59, %v142
    %v144 = vpop.f32.mrf.mxu0
    %v145 = vpop.f32.mrf.mxu0
    %v146 = vadd.f32 %v59, %v145
    %v147 = vpop.f32.mrf.mxu0
    %148 = vmatprep.mubr.bf16.mxu0 0
    %149 = vmatmul.mubr.bf16.gmra.mxu0 %v78
    %v150 = vpop.f32.mrf.mxu0
    %v151 = vadd.f32 %v59, %v150
    %v152 = vpop.f32.mrf.mxu0
    %v153 = vpop.f32.mrf.mxu0
    %v154 = vadd.f32 %v59, %v153
    %v155 = vpop.f32.mrf.mxu0
    %156 = vmatprep.mubr.bf16.mxu0 0
    %157 = vmatmul.mubr.bf16.gmra.mxu0 %v81
    %v158 = vpop.f32.mrf.mxu0
    %v159 = vadd.f32 %v59, %v158
    %v160 = vpop.f32.mrf.mxu0
    %v161 = vpop.f32.mrf.mxu0
    %v162 = vadd.f32 %v59, %v161
    %v163 = vpop.f32.mrf.mxu0
    %164 = vmatprep.mubr.bf16.mxu0 0
    %165 = vmatmul.mubr.bf16.gmra.mxu0 %v84
    %v166 = vpop.f32.mrf.mxu0
    %v167 = vadd.f32 %v59, %v166
    %v168 = vpop.f32.mrf.mxu0
    %v169 = vpop.f32.mrf.mxu0
    %v170 = vadd.f32 %v59, %v169
    %v171 = vpop.f32.mrf.mxu0
    %172 = vmatprep.mubr.bf16.mxu0 0
    %173 = vmatmul.mubr.bf16.gmra.mxu0 %v87
    %v174 = vpop.f32.mrf.mxu0
    %v175 = vadd.f32 %v59, %v174
    %v176 = vpop.f32.mrf.mxu0
    %v177 = vpop.f32.mrf.mxu0
    %v178 = vadd.f32 %v59, %v177
    %v179 = vpop.f32.mrf.mxu0
    %180 = vmatprep.mubr.bf16.mxu0 0
    %181 = vmatmul.mubr.bf16.gmra.mxu0 %v90
    %v182 = vpop.f32.mrf.mxu0
    %v183 = vadd.f32 %v59, %v182
    %v184 = vpop.f32.mrf.mxu0
    %v185 = vpop.f32.mrf.mxu0
    %v186 = vadd.f32 %v59, %v185
    %v187 = vpop.f32.mrf.mxu0
    %188 = vdwg.mxu0
    %v189 = vmax.f32 %v127, 0.0
    %v190 = vmax.f32 %v130, 0.0
    %v191 = vmax.f32 %v135, 0.0
    %v192 = vmax.f32 %v138, 0.0
    %v193 = vmax.f32 %v143, 0.0
    %v194 = vmax.f32 %v146, 0.0
    %v195 = vmax.f32 %v151, 0.0
    %v196 = vmax.f32 %v154, 0.0
    %v197 = vmax.f32 %v159, 0.0
    %v198 = vmax.f32 %v162, 0.0
    %v199 = vmax.f32 %v167, 0.0
    %v200 = vmax.f32 %v170, 0.0
    %v201 = vmax.f32 %v175, 0.0
    %v202 = vmax.f32 %v178, 0.0
    %v203 = vmax.f32 %v183, 0.0
    %v204 = vmax.f32 %v186, 0.0
    %v205 = vld [vmem:[%s3] sm:$0xf]
    %v206 = vld [vmem:[%s3 + $0x4] sm:$0xf]
    %v207 = vld [vmem:[%s3 + $0x8] sm:$0xf]
    %v208 = vld [vmem:[%s3 + $0xc] sm:$0xf]
    %v209 = vld [vmem:[%s4] sm:$0x1]
    %v210 = vpack.c.bf16 %v190, %v189
    %v211 = vpack.c.bf16 %v192, %v191
    %v212 = vpack.c.bf16 %v194, %v193
    %v213 = vpack.c.bf16 %v196, %v195
    %v214 = vpack.c.bf16 %v198, %v197
    %v215 = vpack.c.bf16 %v200, %v199
    %v216 = vpack.c.bf16 %v202, %v201
    %v217 = vpack.c.bf16 %v204, %v203
    %v219 = vlaneseq
    %v220 = vshrl.u32 %v219, 7
    %v221 = vsub.s32 0, %v220
    %v222 = vrot.slane %v209, %v221
    %v228 = vunpack.c.l.b16 %v205
    %v229 = vunpack.c.l.b16 %v206
    %v230 = vunpack.c.l.b16 %v207
    %v231 = vunpack.c.l.b16 %v208
    %v232 = vpack.c.b16 %v229, %v228
    %v233 = vpack.c.b16 %v231, %v230
    %vm236 = vcmask 261120
    %v238 = vsel %vm236, %v210, 0
    %v241 = vsel %vm236, %v211, 0
    %v244 = vsel %vm236, %v212, 0
    %v247 = vsel %vm236, %v213, 0
    %v250 = vsel %vm236, %v214, 0
    %v253 = vsel %vm236, %v215, 0
    %v256 = vsel %vm236, %v216, 0
    %v259 = vsel %vm236, %v217, 0
    %261 = vmatprep.subr.bf16.mxu0 0
    %262 = vmatpush1.bf16.msra.mxu0 0
    %263 = vmatprep.subr.bf16.mxu0 0
    %264 = vmatpush1.bf16.msra.mxu0 0
    %265 = vmatprep.subr.bf16.mxu0 0
    %266 = vmatpush1.bf16.msra.mxu0 0
    %267 = vmatprep.subr.bf16.mxu0 0
    %268 = vmatpush1.bf16.msra.mxu0 0
    %269 = vmatprep.subr.bf16.mxu0 0
    %270 = vmatpush1.bf16.msra.mxu0 0
    %271 = vmatprep.subr.bf16.mxu0 0
    %272 = vmatpush1.bf16.msra.mxu0 0
    %273 = vmatprep.subr.bf16.mxu0 0
    %274 = vmatpush1.bf16.msra.mxu0 %v233
    %275 = vmatprep.subr.bf16.mxu0 0
    %276 = vmatpush1.bf16.msra.mxu0 %v232
    %277 = vmatprep.subr.bf16.mxu0 0
    %278 = vmatpush2.bf16.msra.mxu0 0
    %279 = vmatprep.subr.bf16.mxu0 0
    %280 = vmatpush2.bf16.msra.mxu0 0
    %281 = vmatprep.subr.bf16.mxu0 0
    %282 = vmatpush2.bf16.msra.mxu0 0
    %283 = vmatprep.subr.bf16.mxu0 0
    %284 = vmatpush2.bf16.msra.mxu0 0
    %285 = vmatprep.subr.bf16.mxu0 0
    %286 = vmatpush2.bf16.msra.mxu0 0
    %287 = vmatprep.subr.bf16.mxu0 0
    %288 = vmatpush2.bf16.msra.mxu0 0
    %289 = vmatprep.subr.bf16.mxu0 0
    %290 = vmatpush2.bf16.msra.mxu0 0
    %291 = vmatprep.subr.bf16.mxu0 0
    %292 = vmatpush2.bf16.msra.mxu0 0
    %293 = vmatprep.mubr.bf16.mxu0 0
    %294 = vmatmul.mubr.bf16.gmra.mxu0 %v238
    %v295 = vpop.f32.mrf.mxu0
    %v296 = vadd.f32 %v222, %v295
    %v297 = vpop.f32.mrf.mxu0
    %v298 = vpop.f32.mrf.mxu0
    %v299 = vadd.f32 %v222, %v298
    %v300 = vpop.f32.mrf.mxu0
    %301 = vmatprep.mubr.bf16.mxu0 0
    %302 = vmatmul.mubr.bf16.gmra.mxu0 %v241
    %v303 = vpop.f32.mrf.mxu0
    %v304 = vadd.f32 %v222, %v303
    %v305 = vpop.f32.mrf.mxu0
    %v306 = vpop.f32.mrf.mxu0
    %v307 = vadd.f32 %v222, %v306
    %v308 = vpop.f32.mrf.mxu0
    %309 = vmatprep.mubr.bf16.mxu0 0
    %310 = vmatmul.mubr.bf16.gmra.mxu0 %v244
    %v311 = vpop.f32.mrf.mxu0
    %v312 = vadd.f32 %v222, %v311
    %v313 = vpop.f32.mrf.mxu0
    %v314 = vpop.f32.mrf.mxu0
    %v315 = vadd.f32 %v222, %v314
    %v316 = vpop.f32.mrf.mxu0
    %317 = vmatprep.mubr.bf16.mxu0 0
    %318 = vmatmul.mubr.bf16.gmra.mxu0 %v247
    %v319 = vpop.f32.mrf.mxu0
    %v320 = vadd.f32 %v222, %v319
    %v321 = vpop.f32.mrf.mxu0
    %v322 = vpop.f32.mrf.mxu0
    %v323 = vadd.f32 %v222, %v322
    %v324 = vpop.f32.mrf.mxu0
    %325 = vmatprep.mubr.bf16.mxu0 0
    %326 = vmatmul.mubr.bf16.gmra.mxu0 %v250
    %v327 = vpop.f32.mrf.mxu0
    %v328 = vadd.f32 %v222, %v327
    %v329 = vpop.f32.mrf.mxu0
    %v330 = vpop.f32.mrf.mxu0
    %v331 = vadd.f32 %v222, %v330
    %v332 = vpop.f32.mrf.mxu0
    %333 = vmatprep.mubr.bf16.mxu0 0
    %334 = vmatmul.mubr.bf16.gmra.mxu0 %v253
    %v335 = vpop.f32.mrf.mxu0
    %v336 = vadd.f32 %v222, %v335
    %v337 = vpop.f32.mrf.mxu0
    %v338 = vpop.f32.mrf.mxu0
    %v339 = vadd.f32 %v222, %v338
    %v340 = vpop.f32.mrf.mxu0
    %341 = vmatprep.mubr.bf16.mxu0 0
    %342 = vmatmul.mubr.bf16.gmra.mxu0 %v256
    %v343 = vpop.f32.mrf.mxu0
    %v344 = vadd.f32 %v222, %v343
    %v345 = vpop.f32.mrf.mxu0
    %v346 = vpop.f32.mrf.mxu0
    %v347 = vadd.f32 %v222, %v346
    %v348 = vpop.f32.mrf.mxu0
    %349 = vmatprep.mubr.bf16.mxu0 0
    %350 = vmatmul.mubr.bf16.gmra.mxu0 %v259
    %v351 = vpop.f32.mrf.mxu0
    %v352 = vadd.f32 %v222, %v351
    %v353 = vpop.f32.mrf.mxu0
    %v354 = vpop.f32.mrf.mxu0
    %v355 = vadd.f32 %v222, %v354
    %v356 = vpop.f32.mrf.mxu0
    %357 = vdwg.mxu0
    %v358 = vmax.f32 %v296, 0.0
    %v359 = vmax.f32 %v299, 0.0
    %v360 = vmax.f32 %v304, 0.0
    %v361 = vmax.f32 %v307, 0.0
    %v362 = vmax.f32 %v312, 0.0
    %v363 = vmax.f32 %v315, 0.0
    %v364 = vmax.f32 %v320, 0.0
    %v365 = vmax.f32 %v323, 0.0
    %v366 = vmax.f32 %v328, 0.0
    %v367 = vmax.f32 %v331, 0.0
    %v368 = vmax.f32 %v336, 0.0
    %v369 = vmax.f32 %v339, 0.0
    %v370 = vmax.f32 %v344, 0.0
    %v371 = vmax.f32 %v347, 0.0
    %v372 = vmax.f32 %v352, 0.0
    %v373 = vmax.f32 %v355, 0.0
    %v374 = vld [vmem:[%s5] sm:$0xf]
    %v375 = vld [vmem:[%s5 + $0x4] sm:$0xf]
    %v376 = vld [vmem:[%s5 + $0x8] sm:$0xf]
    %v377 = vld [vmem:[%s5 + $0xc] sm:$0xf]
    %v378 = vld [vmem:[%s5 + $0x10] sm:$0xf]
    %v379 = vld [vmem:[%s5 + $0x14] sm:$0xf]
    %v380 = vld [vmem:[%s5 + $0x18] sm:$0xf]
    %v381 = vld [vmem:[%s5 + $0x1c] sm:$0xf]
    %v382 = vld [vmem:[%s6] sm:$0x1]
    %v383 = vpack.c.bf16 %v359, %v358
    %v384 = vpack.c.bf16 %v361, %v360
    %v385 = vpack.c.bf16 %v363, %v362
    %v386 = vpack.c.bf16 %v365, %v364
    %v387 = vpack.c.bf16 %v367, %v366
    %v388 = vpack.c.bf16 %v369, %v368
    %v389 = vpack.c.bf16 %v371, %v370
    %v390 = vpack.c.bf16 %v373, %v372
    %v392 = vlaneseq
    %v393 = vshrl.u32 %v392, 7
    %v394 = vsub.s32 0, %v393
    %v395 = vrot.slane %v382, %v394
    %v405 = vunpack.c.l.b16 %v374
    %v406 = vunpack.c.l.b16 %v375
    %v407 = vunpack.c.l.b16 %v376
    %v408 = vunpack.c.l.b16 %v377
    %v409 = vunpack.c.l.b16 %v378
    %v410 = vunpack.c.l.b16 %v379
    %v411 = vunpack.c.l.b16 %v380
    %v412 = vunpack.c.l.b16 %v381
    %v413 = vpack.c.b16 %v406, %v405
    %v414 = vpack.c.b16 %v408, %v407
    %v415 = vpack.c.b16 %v410, %v409
    %v416 = vpack.c.b16 %v412, %v411
    %vm421 = vcmask 523264
    %v423 = vsel %vm421, %v383, 0
    %v426 = vsel %vm421, %v384, 0
    %v429 = vsel %vm421, %v385, 0
    %v432 = vsel %vm421, %v386, 0
    %v435 = vsel %vm421, %v387, 0
    %v438 = vsel %vm421, %v388, 0
    %v441 = vsel %vm421, %v389, 0
    %v444 = vsel %vm421, %v390, 0
    %446 = vmatprep.subr.bf16.mxu0 0
    %447 = vmatpush1.bf16.msra.mxu0 0
    %448 = vmatprep.subr.bf16.mxu0 0
    %449 = vmatpush1.bf16.msra.mxu0 0
    %450 = vmatprep.subr.bf16.mxu0 0
    %451 = vmatpush1.bf16.msra.mxu0 0
    %452 = vmatprep.subr.bf16.mxu0 0
    %453 = vmatpush1.bf16.msra.mxu0 0
    %454 = vmatprep.subr.bf16.mxu0 0
    %455 = vmatpush1.bf16.msra.mxu0 %v416
    %456 = vmatprep.subr.bf16.mxu0 0
    %457 = vmatpush1.bf16.msra.mxu0 %v415
    %458 = vmatprep.subr.bf16.mxu0 0
    %459 = vmatpush1.bf16.msra.mxu0 %v414
    %460 = vmatprep.subr.bf16.mxu0 0
    %461 = vmatpush1.bf16.msra.mxu0 %v413
    %462 = vmatprep.subr.bf16.mxu0 0
    %463 = vmatpush2.bf16.msra.mxu0 0
    %464 = vmatprep.subr.bf16.mxu0 0
    %465 = vmatpush2.bf16.msra.mxu0 0
    %466 = vmatprep.subr.bf16.mxu0 0
    %467 = vmatpush2.bf16.msra.mxu0 0
    %468 = vmatprep.subr.bf16.mxu0 0
    %469 = vmatpush2.bf16.msra.mxu0 0
    %470 = vmatprep.subr.bf16.mxu0 0
    %471 = vmatpush2.bf16.msra.mxu0 0
    %472 = vmatprep.subr.bf16.mxu0 0
    %473 = vmatpush2.bf16.msra.mxu0 0
    %474 = vmatprep.subr.bf16.mxu0 0
    %475 = vmatpush2.bf16.msra.mxu0 0
    %476 = vmatprep.subr.bf16.mxu0 0
    %477 = vmatpush2.bf16.msra.mxu0 0
    %478 = vmatprep.mubr.bf16.mxu0 0
    %479 = vmatmul.mubr.bf16.gmra.mxu0 %v423
    %v480 = vpop.f32.mrf.mxu0
    %v481 = vadd.f32 %v395, %v480
    %v482 = vpop.f32.mrf.mxu0
    %v483 = vpop.f32.mrf.mxu0
    %v484 = vadd.f32 %v395, %v483
    %v485 = vpop.f32.mrf.mxu0
    %486 = vmatprep.mubr.bf16.mxu0 0
    %487 = vmatmul.mubr.bf16.gmra.mxu0 %v426
    %v488 = vpop.f32.mrf.mxu0
    %v489 = vadd.f32 %v395, %v488
    %v490 = vpop.f32.mrf.mxu0
    %v491 = vpop.f32.mrf.mxu0
    %v492 = vadd.f32 %v395, %v491
    %v493 = vpop.f32.mrf.mxu0
    %494 = vmatprep.mubr.bf16.mxu0 0
    %495 = vmatmul.mubr.bf16.gmra.mxu0 %v429
    %v496 = vpop.f32.mrf.mxu0
    %v497 = vadd.f32 %v395, %v496
    %v498 = vpop.f32.mrf.mxu0
    %v499 = vpop.f32.mrf.mxu0
    %v500 = vadd.f32 %v395, %v499
    %v501 = vpop.f32.mrf.mxu0
    %502 = vmatprep.mubr.bf16.mxu0 0
    %503 = vmatmul.mubr.bf16.gmra.mxu0 %v432
    %v504 = vpop.f32.mrf.mxu0
    %v505 = vadd.f32 %v395, %v504
    %v506 = vpop.f32.mrf.mxu0
    %v507 = vpop.f32.mrf.mxu0
    %v508 = vadd.f32 %v395, %v507
    %v509 = vpop.f32.mrf.mxu0
    %510 = vmatprep.mubr.bf16.mxu0 0
    %511 = vmatmul.mubr.bf16.gmra.mxu0 %v435
    %v512 = vpop.f32.mrf.mxu0
    %v513 = vadd.f32 %v395, %v512
    %v514 = vpop.f32.mrf.mxu0
    %v515 = vpop.f32.mrf.mxu0
    %v516 = vadd.f32 %v395, %v515
    %v517 = vpop.f32.mrf.mxu0
    %518 = vmatprep.mubr.bf16.mxu0 0
    %519 = vmatmul.mubr.bf16.gmra.mxu0 %v438
    %v520 = vpop.f32.mrf.mxu0
    %v521 = vadd.f32 %v395, %v520
    %v522 = vpop.f32.mrf.mxu0
    %v523 = vpop.f32.mrf.mxu0
    %v524 = vadd.f32 %v395, %v523
    %v525 = vpop.f32.mrf.mxu0
    %526 = vmatprep.mubr.bf16.mxu0 0
    %527 = vmatmul.mubr.bf16.gmra.mxu0 %v441
    %v528 = vpop.f32.mrf.mxu0
    %v529 = vadd.f32 %v395, %v528
    %v530 = vpop.f32.mrf.mxu0
    %v531 = vpop.f32.mrf.mxu0
    %v532 = vadd.f32 %v395, %v531
    %v533 = vpop.f32.mrf.mxu0
    %534 = vmatprep.mubr.bf16.mxu0 0
    %535 = vmatmul.mubr.bf16.gmra.mxu0 %v444
    %v536 = vpop.f32.mrf.mxu0
    %v537 = vadd.f32 %v395, %v536
    %v538 = vpop.f32.mrf.mxu0
    %v539 = vpop.f32.mrf.mxu0
    %v540 = vadd.f32 %v395, %v539
    %v541 = vpop.f32.mrf.mxu0
    %542 = vdwg.mxu0
    %v543 = vtanh.pop %v481
    %v544 = vtanh.pop %v484
    %v545 = vtanh.pop %v489
    %v546 = vtanh.pop %v492
    %v547 = vtanh.pop %v497
    %v548 = vtanh.pop %v500
    %v549 = vtanh.pop %v505
    %v550 = vtanh.pop %v508
    %v551 = vtanh.pop %v513
    %v552 = vtanh.pop %v516
    %v553 = vtanh.pop %v521
    %v554 = vtanh.pop %v524
    %v555 = vtanh.pop %v529
    %v556 = vtanh.pop %v532
    %v557 = vtanh.pop %v537
    %v558 = vtanh.pop %v540
    %559 = vst [vmem:[#allocation2] sm:$0xff] %v543
    %560 = vst [vmem:[#allocation2 + $0x8] sm:$0xff] %v544
    %561 = vst [vmem:[#allocation2 + $0x10] sm:$0xff] %v545
    %562 = vst [vmem:[#allocation2 + $0x18] sm:$0xff] %v546
    %563 = vst [vmem:[#allocation2 + $0x20] sm:$0xff] %v547
    %564 = vst [vmem:[#allocation2 + $0x28] sm:$0xff] %v548
    %565 = vst [vmem:[#allocation2 + $0x30] sm:$0xff] %v549
    %566 = vst [vmem:[#allocation2 + $0x38] sm:$0xff] %v550
    %567 = vst [vmem:[#allocation2 + $0x40] sm:$0xff] %v551
    %568 = vst [vmem:[#allocation2 + $0x48] sm:$0xff] %v552
    %569 = vst [vmem:[#allocation2 + $0x50] sm:$0xff] %v553
    %570 = vst [vmem:[#allocation2 + $0x58] sm:$0xff] %v554
    %571 = vst [vmem:[#allocation2 + $0x60] sm:$0xff] %v555
    %572 = vst [vmem:[#allocation2 + $0x68] sm:$0xff] %v556
    %573 = vst [vmem:[#allocation2 + $0x70] sm:$0xff] %v557
    %574 = vst [vmem:[#allocation2 + $0x78] sm:$0xff] %v558
    // Predicated region
    $region30: #{tpu_custom_call.1} parent=1 // pred_check
      _
    $region31: #{tpu_custom_call.1} parent=1 // pred_check_branch
      %576 = sbr.rel (0) target = $region33
    $region32: #{tpu_custom_call.1} parent=1 // pred_region
      %s578 = ssub.s32 2048, 2048
      %579 = vsyncadd [#allocation3], %s578
      %s580 = sshll.u32 [#allocation2], 4
      %s581 = int_to_ptr.vmem [resolvable:$true] %s580
      %586 = dma.vmem_to_hbm [thread:$0]  %s581, 2048, %s7, [#allocation3], 128, 128, 8
    $region33: #{tpu_custom_call.1} parent=1 // pred_fallthru
      _
    // Predicated region
    $region34: #{tpu_custom_call.1} parent=1 // pred_check
      _
    $region35: #{tpu_custom_call.1} parent=1 // pred_check_branch
      %588 = sbr.rel (0) target = $region37
    $region36: #{tpu_custom_call.1} parent=1 // pred_region
      %589 = dma.done [#allocation3], 2048
    $region37: #{tpu_custom_call.1} parent=1 // pred_fallthru
      _
    %590 = vsyncpa [#allocation3], 1

</llo_original>
